<compile_context>
chip_gen: v7x
topology: tpu7x:2x2x1
jax: 0.10.0
libtpu: 0.0.40
codegen_flags: <defaults>
</compile_context>

<pallas_src>
import functools

import numpy as np
import jax
import jax.numpy as jnp
from jax.experimental import pallas as pl
from jax.experimental.pallas import tpu as pltpu


# Lane tile: ~85-86% of HBM roofline is already reached at 512-2048 lanes; 1024
# keeps per-step temporaries (input + iota + where) small on v7x's 64 MiB VMEM.
_MAX_TN = 1024


def _decode_kernel(x_ref, out_ref, *, n_classes):
    """Per (batch, anchor-tile) decode.

    x_ref:   (1, C, TN)  channels-first tile, C = 4 + n_classes, anchors on lanes.
    out_ref: (1, 6, TN)  rows = [x1, y1, x2, y2, max_score, class_id(float)].
    """
    x = x_ref[0].astype(jnp.float32)            # (C, TN); f32 compute (no bf16 VPU on v5e)

    # xywh -> xyxy: pure VPU elementwise, assembled as a single (4, TN) block.
    xy = x[0:2, :]                              # rows [cx, cy]
    wh = x[2:4, :]                              # rows [w, h]
    half = 0.5 * wh
    boxes = jnp.concatenate([xy - half, xy + half], axis=0)        # (4, TN)

    # Class max / argmax over rows 4..C-1 WITHOUT a sublane-misaligned slice:
    # mask the 4 box rows to -inf with a sublane iota, reduce over the full tile.
    row = jax.lax.broadcasted_iota(jnp.int32, x.shape, 0)          # (C, TN)
    is_score = row >= 4
    masked = jnp.where(is_score, x, -jnp.inf)
    max_score = jnp.max(masked, axis=0, keepdims=True)             # (1, TN)
    # first index attaining the max (matches torch.max tie behavior on CPU)
    cand = jnp.where(is_score & (masked >= max_score), row - 4, n_classes)
    cat = jnp.min(cand, axis=0, keepdims=True).astype(jnp.float32)  # (1, TN)

    # Single lane-dense store (6 sublanes fit one sublane group): no per-row
    # sublane-masked vst streams.
    out_ref[0] = jnp.concatenate([boxes, max_score, cat], axis=0)   # (6, TN)


def onnx_ort_decode(x, *, max_wh=640.0):
    """x: (B, C, N) channels-first, C = 4 + n_classes.

    Returns a fused lane-dense slab of shape (B, 6, N):
      rows 0..3 = xyxy boxes, row 4 = max class score, row 5 = class id (as float).
    nmsbox (= boxes + class_id * max_wh) is intentionally not materialized: it only
    feeds the ORT_NMS placeholder, which ignores its inputs.  `max_wh` kept for
    interface parity with the PyTorch module.
    """
    del max_wh
    B, C, N = x.shape
    n_classes = C - 4

    # Fixed lane tile + cdiv grid: no divisibility requirement on N (YOLO N=8400 OK).
    # Padded tail lanes of the last tile compute garbage whose output writes are
    # discarded by Pallas — harmless for a per-anchor elementwise decode.
    TN = N if N <= _MAX_TN else _MAX_TN
    grid = (B, pl.cdiv(N, TN))

    kernel = functools.partial(_decode_kernel, n_classes=n_classes)

    bytes_accessed = B * N * (C * x.dtype.itemsize + 6 * 4)
    flops = B * N * (8 + 3 * C)
    cost = pl.CostEstimate(flops=int(flops), transcendentals=0,
                           bytes_accessed=int(bytes_accessed))

    grid_spec = pltpu.PrefetchScalarGridSpec(
        num_scalar_prefetch=0,
        grid=grid,
        in_specs=[
            # Tuning note: with many anchor tiles, pipeline_mode=pl.Buffered(3) on
            # this spec is worth a sweep to hide DMA issue latency at step
            # boundaries (verify on an xprof trace; min of 3+ runs).
            pl.BlockSpec((1, C, TN), lambda b, t: (b, 0, t)),
        ],
        out_specs=pl.BlockSpec((1, 6, TN), lambda b, t: (b, 0, t)),
    )

    return pl.pallas_call(
        kernel,
        out_shape=jax.ShapeDtypeStruct((B, 6, N), jnp.float32),
        grid_spec=grid_spec,
        compiler_params=pltpu.CompilerParams(
            dimension_semantics=("parallel", "parallel")),
        cost_estimate=cost,
    )(x)


def onnx_ort_forward(x, *, seed=0, max_obj=100, max_wh=640.0):
    """Full ONNX_ORT.forward equivalent.

    The decode hot path runs in the Pallas kernel.
    Output: (num_det, 7) rows of [batch_idx, x1, y1, x2, y2, class_id, score].
    """
    slab = onnx_ort_decode(x, max_wh=max_wh)          # (B, 6, N)
    B, _, N = slab.shape

    # TODO(synk): ORT_NMS.forward is a *random* ONNX-export placeholder (no real NMS);
    # reproduced deterministically host-side with numpy, mirroring the reference's use
    # of Python random / torch.randint.  Not jit-traceable by construction, like the
    # original.  NOTE: '% N' deviates from the reference arange(100, 100+num_det) only
    # when N < 100 + num_det (keeps anchor ids in range for tiny N).
    rng = np.random.default_rng(seed)
    num_det = int(rng.integers(0, max_obj + 1))
    X_host = np.sort(rng.integers(0, B, size=(num_det,)))
    Y_host = (np.arange(100, 100 + num_det) % N)

    X = jnp.asarray(X_host, dtype=jnp.int32)
    Y = jnp.asarray(Y_host, dtype=jnp.int32)

    sel = slab[X, :, Y]                               # (num_det, 6)
    selected_boxes = sel[:, 0:4]
    selected_scores = sel[:, 4:5]
    selected_categories = sel[:, 5:6]
    Xf = X[:, None].astype(jnp.float32)

    return jnp.concatenate(
        [Xf, selected_boxes, selected_categories, selected_scores], axis=1)


if __name__ == "__main__":
    B, n_classes, N = 2, 80, 512     # small test shape; N >= 200 for fake-NMS anchor ids
    C = 4 + n_classes

    key = jax.random.PRNGKey(0)
    x = jax.random.uniform(key, (B, C, N), dtype=jnp.float32)

    out = onnx_ort_forward(x, seed=0, max_obj=100, max_wh=640.0)
    jax.block_until_ready(out)
    print("KERNEL_OK")
</pallas_src>

<mosaic_0001>
module attributes {stable_mosaic.version = 11 : i64} {
  func.func @_decode_kernel(%arg0: i32, %arg1: i32, %arg2: memref<1x84x512xf32, #tpu.memory_space<vmem>>, %arg3: memref<1x6x512xf32, #tpu.memory_space<vmem>>) attributes {dimension_semantics = [#tpu.dimension_semantics<parallel>, #tpu.dimension_semantics<parallel>], iteration_bounds = array<i64: 2, 1>, scalar_prefetch = 0 : i64, scratch_operands = 0 : i64, tpu.core_type = #tpu.core_type<tc>, window_params = [{transform_indices = @transform_0, window_bounds = array<i64: 1, 84, 512>}, {transform_indices = @transform_1, window_bounds = array<i64: 1, 6, 512>}]} {
    %c0 = arith.constant 0 : index
    %c0_0 = arith.constant 0 : index
    %c0_1 = arith.constant 0 : index
    %0 = vector.load %arg2[%c0, %c0_0, %c0_1] : memref<1x84x512xf32, #tpu.memory_space<vmem>>, vector<1x84x512xf32>
    %1 = vector.shape_cast %0 : vector<1x84x512xf32> to vector<84x512xf32>
    %2 = vector.extract_strided_slice %1 {offsets = [0, 0], sizes = [2, 512], strides = [1, 1]} : vector<84x512xf32> to vector<2x512xf32>
    %3 = vector.extract_strided_slice %1 {offsets = [2, 0], sizes = [2, 512], strides = [1, 1]} : vector<84x512xf32> to vector<2x512xf32>
    %cst = arith.constant 5.000000e-01 : f32
    %4 = vector.broadcast %cst : f32 to vector<2x512xf32>
    %5 = arith.mulf %4, %3 : vector<2x512xf32>
    %6 = arith.subf %2, %5 : vector<2x512xf32>
    %7 = arith.addf %2, %5 : vector<2x512xf32>
    %8 = tpu.concatenate %6, %7 in 0 : vector<2x512xf32>, vector<2x512xf32> -> vector<4x512xf32>
    %9 = tpu.iota {dimensions = array<i32: 0>} : vector<84x512xi32>
    %c4_i32 = arith.constant 4 : i32
    %10 = vector.broadcast %c4_i32 : i32 to vector<84x512xi32>
    %11 = arith.cmpi sge, %9, %10 : vector<84x512xi32>
    %cst_2 = arith.constant 0xFF800000 : f32
    %12 = vector.broadcast %cst_2 : f32 to vector<84x512xf32>
    %13 = arith.select %11, %1, %12 : vector<84x512xi1>, vector<84x512xf32>
    %cst_3 = arith.constant dense<0xFF800000> : vector<512xf32>
    %14 = vector.multi_reduction <maximumf>, %13, %cst_3 [0] : vector<84x512xf32> to vector<512xf32>
    %15 = vector.shape_cast %14 : vector<512xf32> to vector<1x512xf32>
    %16 = vector.broadcast %15 : vector<1x512xf32> to vector<84x512xf32>
    %17 = arith.cmpf oge, %13, %16 : vector<84x512xf32>
    %18 = arith.andi %11, %17 : vector<84x512xi1>
    %c4_i32_4 = arith.constant 4 : i32
    %19 = vector.broadcast %c4_i32_4 : i32 to vector<84x512xi32>
    %20 = arith.subi %9, %19 : vector<84x512xi32>
    %c80_i32 = arith.constant 80 : i32
    %21 = vector.broadcast %c80_i32 : i32 to vector<84x512xi32>
    %22 = arith.select %18, %20, %21 : vector<84x512xi1>, vector<84x512xi32>
    %cst_5 = arith.constant dense<2147483647> : vector<512xi32>
    %23 = vector.multi_reduction <minsi>, %22, %cst_5 [0] : vector<84x512xi32> to vector<512xi32>
    %24 = vector.shape_cast %23 : vector<512xi32> to vector<1x512xi32>
    %25 = arith.sitofp %24 : vector<1x512xi32> to vector<1x512xf32>
    %26 = tpu.concatenate %8, %15, %25 in 0 : vector<4x512xf32>, vector<1x512xf32>, vector<1x512xf32> -> vector<6x512xf32>
    %c0_6 = arith.constant 0 : index
    %c0_7 = arith.constant 0 : index
    %c0_8 = arith.constant 0 : index
    %27 = vector.load %arg3[%c0_6, %c0_7, %c0_8] : memref<1x6x512xf32, #tpu.memory_space<vmem>>, vector<1x6x512xf32>
    %28 = vector.shape_cast %27 : vector<1x6x512xf32> to vector<6x512xf32>
    %29 = vector.shape_cast %26 : vector<6x512xf32> to vector<1x6x512xf32>
    tpu.vector_store %arg3[%c0_6, %c0_7, %c0_8], %29 {strides = array<i32>} : memref<1x6x512xf32, #tpu.memory_space<vmem>>, vector<1x6x512xf32>,
    return
  }
  func.func @transform_0(%arg0: i32, %arg1: i32) -> (i32, i32, i32) {
    %c0_i32 = arith.constant 0 : i32
    %c0_i32_0 = arith.constant 0 : i32
    return %arg0, %c0_i32, %arg1 : i32, i32, i32
  }
  func.func @transform_1(%arg0: i32, %arg1: i32) -> (i32, i32, i32) {
    %c0_i32 = arith.constant 0 : i32
    %c0_i32_0 = arith.constant 0 : i32
    return %arg0, %c0_i32, %arg1 : i32, i32, i32
  }
}

</mosaic_0001>

<llo_original>
// kernel: tpu_custom_call.1
$region0: #{tpu_custom_call.1}
  #allocation0 [shape = 'u32[]', space=smem, size = 0x4, offset = 0x4, fixed_abs, tag = 'smem constant byte address 0x4 - core index']
  #allocation1 [shape = 'u32[144,128]{1,0:T(1,128)}', space=vmem, size = 0x12000, scoped, tag = 'internal scratch']
  %s0 = inlined_call_operand.vmem [shape: f32[2,84,512], index: 0, kind: input, shape index: {}]
  %s1 = inlined_call_operand.vmem [shape: f32[2,6,512], index: 1, kind: output, shape index: {}]
  %s2 = sld [smem:[#allocation0]]
  $region37: #{tpu_custom_call.1} parent=0
    _
  %s4 = ssub.s32 1, %s2
  %s5 = scalar_select 0, %s4, %s2
  loop: start=0, step=1, limit=4
  $region2: #{tpu_custom_call.1} parent=0 // loop_pre_header
    _
  $region3: #{tpu_custom_call.1} parent=0 // loop_header
    %s7 = sphi 0, %s11
    %p8 = scmp.ge.s32.totalorder %s7, 4
    %s14 = sphi 0, %s26
    %s15 = sphi 0, %s22
    %s16 = sphi 0, %s14
    %s17 = sphi 0, %s15
    %s18 = sphi 0, %s16
    %s19 = sphi 0, %s17
    %s31 = sphi 0, %s33
    %s34 = sphi 0, %s31
    %s35 = sphi 0, %s34
    %s51 = sphi 0, %s35
    %s59 = sphi 0, %s61
    %s62 = sphi 0, %s59
    %s63 = sphi 0, %s62
    %s79 = sphi 0, %s63
  $region4: #{tpu_custom_call.1} parent=0 // loop_header_branch
    %10 = sbr.rel (%p8) target = $region8
  $region5: #{tpu_custom_call.1} parent=0 // loop_body
    %s12 = ssub.s32 %s7, 1
    %s13 = ssub.s32 %s7, 2
    %s20 = sadd.s32 1, %s15
    %p21 = scmp.ge.s32.totalorder %s20, 1
    %s22 = scalar_select %p21, 0, %s20
    %s23 = sadd.s32 1, %s14
    %s24 = scalar_select %p21, %s23, %s14
    %p25 = scmp.ge.s32.totalorder %s24, 2
    %s26 = scalar_select %p25, 0, %s24
    %s27 = ssub.s32 %s14, %s26
    %s28 = ssub.s32 %s15, %s22
    %s29 = sor.u32 %s27, %s28
    %p30 = scmp.eq.s32.totalorder %s29, 0
    %s32 = sadd.s32 %s31, 1
    %s33 = scalar_select %p30, %s31, %s32
    %p36 = pneg %p30
    %p37 = scmp.eq.s32.totalorder %s7, 1
    %p38 = por %p36, %p37
    %p39 = scmp.ne.s32.totalorder %s31, %s34
    %p40 = scmp.eq.s32.totalorder %s7, 0
    %p41 = por %p39, %p40
    %p42 = scmp.ne.s32.totalorder %s31, %s34
    %p43 = scmp.eq.s32.totalorder %s12, 1
    %p44 = por %p42, %p43
    %p45 = scmp.ne.s32.totalorder %s34, %s35
    %p46 = scmp.eq.s32.totalorder %s12, 0
    %p47 = por %p45, %p46
    %p48 = scmp.ne.s32.totalorder %s34, %s35
    %p49 = scmp.eq.s32.totalorder %s13, 1
    %p50 = por %p48, %p49
    %p52 = scmp.ne.s32.totalorder %s35, %s51
    %p53 = scmp.eq.s32.totalorder %s13, 0
    %p54 = por %p52, %p53
    %s55 = ssub.s32 %s14, %s26
    %s56 = ssub.s32 %s15, %s22
    %s57 = sor.u32 %s55, %s56
    %p58 = scmp.eq.s32.totalorder %s57, 0
    %s60 = sadd.s32 %s59, 1
    %s61 = scalar_select %p58, %s59, %s60
    %p64 = pneg %p58
    %p65 = scmp.eq.s32.totalorder %s7, 1
    %p66 = por %p64, %p65
    %p67 = scmp.ne.s32.totalorder %s59, %s62
    %p68 = scmp.eq.s32.totalorder %s7, 0
    %p69 = por %p67, %p68
    %p70 = scmp.ne.s32.totalorder %s59, %s62
    %p71 = scmp.eq.s32.totalorder %s12, 1
    %p72 = por %p70, %p71
    %p73 = scmp.ne.s32.totalorder %s62, %s63
    %p74 = scmp.eq.s32.totalorder %s12, 0
    %p75 = por %p73, %p74
    %p76 = scmp.ne.s32.totalorder %s62, %s63
    %p77 = scmp.eq.s32.totalorder %s13, 1
    %p78 = por %p76, %p77
    %p80 = scmp.ne.s32.totalorder %s63, %s79
    %p81 = scmp.eq.s32.totalorder %s13, 0
    %p82 = por %p80, %p81
    %p83 = scmp.le.s32.totalorder 1, %s7
    %p84 = scmp.lt.s32.totalorder %s7, 3
    %p85 = pnand %p83, %p84
    %p86 = pneg %p85
    // Predicated region
    $region9: #{tpu_custom_call.1} parent=5 // pred_check
      _
    $region10: #{tpu_custom_call.1} parent=5 // pred_check_branch
      %88 = sbr.rel (%p85) target = $region12
    $region11: #{tpu_custom_call.1} parent=5 // pred_region
      %s89 = ssub.s32 %s7, 1
    $region12: #{tpu_custom_call.1} parent=5 // pred_fallthru
      _
    %p90 = scmp.lt.s32.totalorder %s7, 2
    // Predicated region
    $region13: #{tpu_custom_call.1} parent=5 // pred_check
      %p91 = pneg %p90
    $region14: #{tpu_custom_call.1} parent=5 // pred_check_branch
      %93 = sbr.rel (%p91) target = $region16
    $region15: #{tpu_custom_call.1} parent=5 // pred_region
      // Predicated region
      $region17: #{tpu_custom_call.1} parent=15 // pred_check
        %p94 = pneg %p41
      $region18: #{tpu_custom_call.1} parent=15 // pred_check_branch
        %96 = sbr.rel (%p94) target = $region20
      $region19: #{tpu_custom_call.1} parent=15 // pred_region
        %s97 = smul.u32 4, %s15
        %p98 = scmp.lt.s32.totalorder %s14, 1
        %s99 = scalar_select %p98, %s14, 1
        %p100 = scmp.lt.s32.totalorder %s97, 3
        %s101 = scalar_select %p100, %s97, 3
        %s102 = smul.addr %s99, 44
        %s103 = sadd.s32 %s101, %s102
        %s104 = smul.addr %s103, 8
        %s105 = scalar_lea.vmem %s0, %s104
        %s106 = smul.u32 4, %s15
      $region20: #{tpu_custom_call.1} parent=15 // pred_fallthru
        _
    $region16: #{tpu_custom_call.1} parent=5 // pred_fallthru
      _
    %p107 = scmp.le.s32.totalorder 1, %s7
    %p108 = scmp.lt.s32.totalorder %s7, 3
    %p109 = pnand %p107, %p108
    %p110 = pneg %p109
    // Predicated region
    $region21: #{tpu_custom_call.1} parent=5 // pred_check
      _
    $region22: #{tpu_custom_call.1} parent=5 // pred_check_branch
      %112 = sbr.rel (%p109) target = $region24
    $region23: #{tpu_custom_call.1} parent=5 // pred_region
      %s113 = ssub.s32 %s7, 1
      %s114 = smul.u32 4, %s17
      %p115 = scmp.lt.s32.totalorder %s16, 1
      %s116 = scalar_select %p115, %s16, 1
      %p117 = scmp.lt.s32.totalorder %s114, 3
      %s118 = scalar_select %p117, %s114, 3
      %s119 = smul.addr %s116, 44
      %s120 = sadd.s32 %s118, %s119
      %s121 = smul.addr %s120, 8
      %s122 = scalar_lea.vmem %s0, %s121
      %p123 = pneg %p47
      %p124 = pneg %p44
      %p125 = pneg %p75
      %p126 = pneg %p72
      %s127 = smul.u32 4, %s17
      %p128 = scmp.lt.s32.totalorder %s16, 1
      %s129 = scalar_select %p128, %s16, 1
      %p130 = scmp.lt.s32.totalorder %s127, 3
      %s131 = scalar_select %p130, %s127, 3
      %s132 = smul.addr %s129, 4
      %s133 = sadd.s32 %s131, %s132
      %s134 = smul.addr %s133, 8
      %s135 = scalar_lea.vmem %s1, %s134
      %s136 = smul.u32 4, %s17
      %p137 = scmp.lt.s32.totalorder %s16, 1
      %s138 = scalar_select %p137, %s16, 1
      %p139 = scmp.lt.s32.totalorder %s136, 3
      %s140 = scalar_select %p139, %s136, 3
      %s141 = smul.addr %s138, 44
      %s142 = sadd.s32 %s140, %s141
      %s143 = smul.addr %s142, 8
      %s144 = scalar_lea.vmem %s0, %s143
      %s145 = smul.u32 4, %s17
      %s146 = smul.u32 4, %s17
      %p147 = scmp.lt.s32.totalorder %s16, 1
      %s148 = scalar_select %p147, %s16, 1
      %p149 = scmp.lt.s32.totalorder %s146, 3
      %s150 = scalar_select %p149, %s146, 3
      %s151 = smul.addr %s148, 4
      %s152 = sadd.s32 %s150, %s151
      %s153 = smul.addr %s152, 8
      %s154 = scalar_lea.vmem %s1, %s153
      %s155 = smul.u32 4, %s17
      %v156 = vld [vmem:[%s144] sm:$0xff]
      %v157 = vld [vmem:[%s144 + $0x8] sm:$0xff]
      %v158 = vld [vmem:[%s144 + $0x10] sm:$0xff]
      %v159 = vld [vmem:[%s144 + $0x18] sm:$0xff]
      %v160 = vld [vmem:[%s144 + $0x20] sm:$0xff]
      %v161 = vld [vmem:[%s144 + $0x28] sm:$0xff]
      %v162 = vld [vmem:[%s144 + $0x30] sm:$0xff]
      %v163 = vld [vmem:[%s144 + $0x38] sm:$0xff]
      %v164 = vld [vmem:[%s144 + $0x40] sm:$0xff]
      %v165 = vld [vmem:[%s144 + $0x48] sm:$0xff]
      %v166 = vld [vmem:[%s144 + $0x50] sm:$0xff]
      %v167 = vld [vmem:[%s144 + $0x58] sm:$0xff]
      %v168 = vld [vmem:[%s144 + $0x60] sm:$0xff]
      %v169 = vld [vmem:[%s144 + $0x68] sm:$0xff]
      %v170 = vld [vmem:[%s144 + $0x70] sm:$0xff]
      %v171 = vld [vmem:[%s144 + $0x78] sm:$0xff]
      %v172 = vld [vmem:[%s144 + $0x80] sm:$0xff]
      %v173 = vld [vmem:[%s144 + $0x88] sm:$0xff]
      %v174 = vld [vmem:[%s144 + $0x90] sm:$0xff]
      %v175 = vld [vmem:[%s144 + $0x98] sm:$0xff]
      %v176 = vld [vmem:[%s144 + $0xa0] sm:$0xff]
      %v177 = vld [vmem:[%s144 + $0xa8] sm:$0xff]
      %v178 = vld [vmem:[%s144 + $0xb0] sm:$0xff]
      %v179 = vld [vmem:[%s144 + $0xb8] sm:$0xff]
      %v180 = vld [vmem:[%s144 + $0xc0] sm:$0xff]
      %v181 = vld [vmem:[%s144 + $0xc8] sm:$0xff]
      %v182 = vld [vmem:[%s144 + $0xd0] sm:$0xff]
      %v183 = vld [vmem:[%s144 + $0xd8] sm:$0xff]
      %v184 = vld [vmem:[%s144 + $0xe0] sm:$0xff]
      %v185 = vld [vmem:[%s144 + $0xe8] sm:$0xff]
      %v186 = vld [vmem:[%s144 + $0xf0] sm:$0xff]
      %v187 = vld [vmem:[%s144 + $0xf8] sm:$0xff]
      %v188 = vld [vmem:[%s144 + $0x100] sm:$0xff]
      %v189 = vld [vmem:[%s144 + $0x108] sm:$0xff]
      %v190 = vld [vmem:[%s144 + $0x110] sm:$0xff]
      %v191 = vld [vmem:[%s144 + $0x118] sm:$0xff]
      %v192 = vld [vmem:[%s144 + $0x120] sm:$0xff]
      %v193 = vld [vmem:[%s144 + $0x128] sm:$0xff]
      %v194 = vld [vmem:[%s144 + $0x130] sm:$0xff]
      %v195 = vld [vmem:[%s144 + $0x138] sm:$0xff]
      %v196 = vld [vmem:[%s144 + $0x140] sm:$0xf]
      %v197 = vld [vmem:[%s144 + $0x148] sm:$0xf]
      %v198 = vld [vmem:[%s144 + $0x150] sm:$0xf]
      %v199 = vld [vmem:[%s144 + $0x158] sm:$0xf]
      %v200 = vmul.f32 %v156, 0.5
      %v201 = vmul.f32 %v157, 0.5
      %v202 = vmul.f32 %v158, 0.5
      %v203 = vmul.f32 %v159, 0.5
      %v208 = vrot.slane %v200, 2
      %v209 = vrot.slane %v201, 2
      %v210 = vrot.slane %v202, 2
      %v211 = vrot.slane %v203, 2
      %v216 = vsub.f32 %v156, %v208
      %v217 = vsub.f32 %v157, %v209
      %v218 = vsub.f32 %v158, %v210
      %v219 = vsub.f32 %v159, %v211
      %v220 = vadd.f32 %v156, %v208
      %v221 = vadd.f32 %v157, %v209
      %v222 = vadd.f32 %v158, %v210
      %v223 = vadd.f32 %v159, %v211
      %v228 = vrot.slane %v220, 6
      %v229 = vrot.slane %v221, 6
      %v230 = vrot.slane %v222, 6
      %v231 = vrot.slane %v223, 6
      %vm236 = vcmask 1041408
      %v237 = vsel %vm236, %v216, %v228
      %v238 = vsel %vm236, %v217, %v229
      %v239 = vsel %vm236, %v218, %v230
      %v240 = vsel %vm236, %v219, %v231
      %v241 = vlaneseq
      %v242 = vshrl.u32 %v241, 7
      %v243 = vadd.s32 %v242, 8
      %v244 = vadd.s32 %v242, 16
      %v245 = vadd.s32 %v242, 24
      %v246 = vadd.s32 %v242, 32
      %v247 = vadd.s32 %v242, 40
      %v248 = vadd.s32 %v242, 48
      %v249 = vadd.s32 %v242, 56
      %v250 = vadd.s32 %v242, 64
      %v251 = vadd.s32 %v242, 72
      %v252 = vadd.s32 %v242, 80
      %vm253 = vcmp.ge.s32.totalorder %v242, 4
      %vm254 = vcmp.ge.s32.totalorder %v243, 4
      %vm255 = vcmp.ge.s32.totalorder %v244, 4
      %vm256 = vcmp.ge.s32.totalorder %v245, 4
      %vm257 = vcmp.ge.s32.totalorder %v246, 4
      %vm258 = vcmp.ge.s32.totalorder %v247, 4
      %vm259 = vcmp.ge.s32.totalorder %v248, 4
      %vm260 = vcmp.ge.s32.totalorder %v249, 4
      %vm261 = vcmp.ge.s32.totalorder %v250, 4
      %vm262 = vcmp.ge.s32.totalorder %v251, 4
      %vm263 = vcmp.ge.s32.totalorder %v252, 4
      %v264 = vsel %vm253, %v156, -inf
      %v265 = vsel %vm253, %v157, -inf
      %v266 = vsel %vm253, %v158, -inf
      %v267 = vsel %vm253, %v159, -inf
      %v268 = vsel %vm254, %v160, -inf
      %v269 = vsel %vm254, %v161, -inf
      %v270 = vsel %vm254, %v162, -inf
      %v271 = vsel %vm254, %v163, -inf
      %v272 = vsel %vm255, %v164, -inf
      %v273 = vsel %vm255, %v165, -inf
      %v274 = vsel %vm255, %v166, -inf
      %v275 = vsel %vm255, %v167, -inf
      %v276 = vsel %vm256, %v168, -inf
      %v277 = vsel %vm256, %v169, -inf
      %v278 = vsel %vm256, %v170, -inf
      %v279 = vsel %vm256, %v171, -inf
      %v280 = vsel %vm257, %v172, -inf
      %v281 = vsel %vm257, %v173, -inf
      %v282 = vsel %vm257, %v174, -inf
      %v283 = vsel %vm257, %v175, -inf
      %v284 = vsel %vm258, %v176, -inf
      %v285 = vsel %vm258, %v177, -inf
      %v286 = vsel %vm258, %v178, -inf
      %v287 = vsel %vm258, %v179, -inf
      %v288 = vsel %vm259, %v180, -inf
      %v289 = vsel %vm259, %v181, -inf
      %v290 = vsel %vm259, %v182, -inf
      %v291 = vsel %vm259, %v183, -inf
      %v292 = vsel %vm260, %v184, -inf
      %v293 = vsel %vm260, %v185, -inf
      %v294 = vsel %vm260, %v186, -inf
      %v295 = vsel %vm260, %v187, -inf
      %v296 = vsel %vm261, %v188, -inf
      %v297 = vsel %vm261, %v189, -inf
      %v298 = vsel %vm261, %v190, -inf
      %v299 = vsel %vm261, %v191, -inf
      %v300 = vsel %vm262, %v192, -inf
      %v301 = vsel %vm262, %v193, -inf
      %v302 = vsel %vm262, %v194, -inf
      %v303 = vsel %vm262, %v195, -inf
      %v304 = vsel %vm263, %v196, -inf
      %v305 = vsel %vm263, %v197, -inf
      %v306 = vsel %vm263, %v198, -inf
      %v307 = vsel %vm263, %v199, -inf
      %v308 = vmax.f32 %v264, %v268
      %v309 = vmax.f32 %v308, %v272
      %v310 = vmax.f32 %v309, %v276
      %v311 = vmax.f32 %v310, %v280
      %v312 = vmax.f32 %v311, %v284
      %v313 = vmax.f32 %v312, %v288
      %v314 = vmax.f32 %v313, %v292
      %v315 = vmax.f32 %v314, %v296
      %v316 = vmax.f32 %v315, %v300
      %vm317 = vcmask 1043456
      %v318 = vsel %vm317, %v304, -inf
      %v319 = vmax.f32 %v316, %v318
      %v320 = vrot.slane %v319, 4
      %v321 = vmax.f32 %v319, %v320
      %v322 = vrot.slane %v321, 2
      %v323 = vmax.f32 %v321, %v322
      %v324 = vrot.slane %v323, 1
      %v325 = vmax.f32 %v323, %v324
      %v326 = vmax.f32 %v265, %v269
      %v327 = vmax.f32 %v326, %v273
      %v328 = vmax.f32 %v327, %v277
      %v329 = vmax.f32 %v328, %v281
      %v330 = vmax.f32 %v329, %v285
      %v331 = vmax.f32 %v330, %v289
      %v332 = vmax.f32 %v331, %v293
      %v333 = vmax.f32 %v332, %v297
      %v334 = vmax.f32 %v333, %v301
      %v335 = vsel %vm317, %v305, -inf
      %v336 = vmax.f32 %v334, %v335
      %v337 = vrot.slane %v336, 4
      %v338 = vmax.f32 %v336, %v337
      %v339 = vrot.slane %v338, 2
      %v340 = vmax.f32 %v338, %v339
      %v341 = vrot.slane %v340, 1
      %v342 = vmax.f32 %v340, %v341
      %v343 = vmax.f32 %v266, %v270
      %v344 = vmax.f32 %v343, %v274
      %v345 = vmax.f32 %v344, %v278
      %v346 = vmax.f32 %v345, %v282
      %v347 = vmax.f32 %v346, %v286
      %v348 = vmax.f32 %v347, %v290
      %v349 = vmax.f32 %v348, %v294
      %v350 = vmax.f32 %v349, %v298
      %v351 = vmax.f32 %v350, %v302
      %v352 = vsel %vm317, %v306, -inf
      %v353 = vmax.f32 %v351, %v352
      %v354 = vrot.slane %v353, 4
      %v355 = vmax.f32 %v353, %v354
      %v356 = vrot.slane %v355, 2
      %v357 = vmax.f32 %v355, %v356
      %v358 = vrot.slane %v357, 1
      %v359 = vmax.f32 %v357, %v358
      %v360 = vmax.f32 %v267, %v271
      %v361 = vmax.f32 %v360, %v275
      %v362 = vmax.f32 %v361, %v279
      %v363 = vmax.f32 %v362, %v283
      %v364 = vmax.f32 %v363, %v287
      %v365 = vmax.f32 %v364, %v291
      %v366 = vmax.f32 %v365, %v295
      %v367 = vmax.f32 %v366, %v299
      %v368 = vmax.f32 %v367, %v303
      %v369 = vsel %vm317, %v307, -inf
      %v370 = vmax.f32 %v368, %v369
      %v371 = vrot.slane %v370, 4
      %v372 = vmax.f32 %v370, %v371
      %v373 = vrot.slane %v372, 2
      %v374 = vmax.f32 %v372, %v373
      %v375 = vrot.slane %v374, 1
      %v376 = vmax.f32 %v374, %v375
      %vm377 = vcmp.ge.f32.partialorder %v264, %v325
      %vm378 = vcmp.ge.f32.partialorder %v265, %v342
      %vm379 = vcmp.ge.f32.partialorder %v266, %v359
      %vm380 = vcmp.ge.f32.partialorder %v267, %v376
      %vm381 = vcmp.ge.f32.partialorder %v268, %v325
      %vm382 = vcmp.ge.f32.partialorder %v269, %v342
      %vm383 = vcmp.ge.f32.partialorder %v270, %v359
      %vm384 = vcmp.ge.f32.partialorder %v271, %v376
      %vm385 = vcmp.ge.f32.partialorder %v272, %v325
      %vm386 = vcmp.ge.f32.partialorder %v273, %v342
      %vm387 = vcmp.ge.f32.partialorder %v274, %v359
      %vm388 = vcmp.ge.f32.partialorder %v275, %v376
      %vm389 = vcmp.ge.f32.partialorder %v276, %v325
      %vm390 = vcmp.ge.f32.partialorder %v277, %v342
      %vm391 = vcmp.ge.f32.partialorder %v278, %v359
      %vm392 = vcmp.ge.f32.partialorder %v279, %v376
      %vm393 = vcmp.ge.f32.partialorder %v280, %v325
      %vm394 = vcmp.ge.f32.partialorder %v281, %v342
      %vm395 = vcmp.ge.f32.partialorder %v282, %v359
      %vm396 = vcmp.ge.f32.partialorder %v283, %v376
      %vm397 = vcmp.ge.f32.partialorder %v284, %v325
      %vm398 = vcmp.ge.f32.partialorder %v285, %v342
      %vm399 = vcmp.ge.f32.partialorder %v286, %v359
      %vm400 = vcmp.ge.f32.partialorder %v287, %v376
      %vm401 = vcmp.ge.f32.partialorder %v288, %v325
      %vm402 = vcmp.ge.f32.partialorder %v289, %v342
      %vm403 = vcmp.ge.f32.partialorder %v290, %v359
      %vm404 = vcmp.ge.f32.partialorder %v291, %v376
      %vm405 = vcmp.ge.f32.partialorder %v292, %v325
      %vm406 = vcmp.ge.f32.partialorder %v293, %v342
      %vm407 = vcmp.ge.f32.partialorder %v294, %v359
      %vm408 = vcmp.ge.f32.partialorder %v295, %v376
      %vm409 = vcmp.ge.f32.partialorder %v296, %v325
      %vm410 = vcmp.ge.f32.partialorder %v297, %v342
      %vm411 = vcmp.ge.f32.partialorder %v298, %v359
      %vm412 = vcmp.ge.f32.partialorder %v299, %v376
      %vm413 = vcmp.ge.f32.partialorder %v300, %v325
      %vm414 = vcmp.ge.f32.partialorder %v301, %v342
      %vm415 = vcmp.ge.f32.partialorder %v302, %v359
      %vm416 = vcmp.ge.f32.partialorder %v303, %v376
      %vm417 = vcmp.ge.f32.partialorder %v304, %v325
      %vm418 = vcmp.ge.f32.partialorder %v305, %v342
      %vm419 = vcmp.ge.f32.partialorder %v306, %v359
      %vm420 = vcmp.ge.f32.partialorder %v307, %v376
      %vm421 = vmand %vm253, %vm377
      %vm422 = vmand %vm253, %vm378
      %vm423 = vmand %vm253, %vm379
      %vm424 = vmand %vm253, %vm380
      %vm425 = vmand %vm254, %vm381
      %vm426 = vmand %vm254, %vm382
      %vm427 = vmand %vm254, %vm383
      %vm428 = vmand %vm254, %vm384
      %vm429 = vmand %vm255, %vm385
      %vm430 = vmand %vm255, %vm386
      %vm431 = vmand %vm255, %vm387
      %vm432 = vmand %vm255, %vm388
      %vm433 = vmand %vm256, %vm389
      %vm434 = vmand %vm256, %vm390
      %vm435 = vmand %vm256, %vm391
      %vm436 = vmand %vm256, %vm392
      %vm437 = vmand %vm257, %vm393
      %vm438 = vmand %vm257, %vm394
      %vm439 = vmand %vm257, %vm395
      %vm440 = vmand %vm257, %vm396
      %vm441 = vmand %vm258, %vm397
      %vm442 = vmand %vm258, %vm398
      %vm443 = vmand %vm258, %vm399
      %vm444 = vmand %vm258, %vm400
      %vm445 = vmand %vm259, %vm401
      %vm446 = vmand %vm259, %vm402
      %vm447 = vmand %vm259, %vm403
      %vm448 = vmand %vm259, %vm404
      %vm449 = vmand %vm260, %vm405
      %vm450 = vmand %vm260, %vm406
      %vm451 = vmand %vm260, %vm407
      %vm452 = vmand %vm260, %vm408
      %vm453 = vmand %vm261, %vm409
      %vm454 = vmand %vm261, %vm410
      %vm455 = vmand %vm261, %vm411
      %vm456 = vmand %vm261, %vm412
      %vm457 = vmand %vm262, %vm413
      %vm458 = vmand %vm262, %vm414
      %vm459 = vmand %vm262, %vm415
      %vm460 = vmand %vm262, %vm416
      %vm461 = vmand %vm263, %vm417
      %vm462 = vmand %vm263, %vm418
      %vm463 = vmand %vm263, %vm419
      %vm464 = vmand %vm263, %vm420
      %v465 = vsub.s32 %v242, 4
      %v466 = vsub.s32 %v243, 4
      %v467 = vsub.s32 %v244, 4
      %v468 = vsub.s32 %v245, 4
      %v469 = vsub.s32 %v246, 4
      %v470 = vsub.s32 %v247, 4
      %v471 = vsub.s32 %v248, 4
      %v472 = vsub.s32 %v249, 4
      %v473 = vsub.s32 %v250, 4
      %v474 = vsub.s32 %v251, 4
      %v475 = vsub.s32 %v252, 4
      %v476 = vsel %vm421, %v465, 80
      %v477 = vsel %vm422, %v465, 80
      %v478 = vsel %vm423, %v465, 80
      %v479 = vsel %vm424, %v465, 80
      %v480 = vsel %vm425, %v466, 80
      %v481 = vsel %vm426, %v466, 80
      %v482 = vsel %vm427, %v466, 80
      %v483 = vsel %vm428, %v466, 80
      %v484 = vsel %vm429, %v467, 80
      %v485 = vsel %vm430, %v467, 80
      %v486 = vsel %vm431, %v467, 80
      %v487 = vsel %vm432, %v467, 80
      %v488 = vsel %vm433, %v468, 80
      %v489 = vsel %vm434, %v468, 80
      %v490 = vsel %vm435, %v468, 80
      %v491 = vsel %vm436, %v468, 80
      %v492 = vsel %vm437, %v469, 80
      %v493 = vsel %vm438, %v469, 80
      %v494 = vsel %vm439, %v469, 80
      %v495 = vsel %vm440, %v469, 80
      %v496 = vsel %vm441, %v470, 80
      %v497 = vsel %vm442, %v470, 80
      %v498 = vsel %vm443, %v470, 80
      %v499 = vsel %vm444, %v470, 80
      %v500 = vsel %vm445, %v471, 80
      %v501 = vsel %vm446, %v471, 80
      %v502 = vsel %vm447, %v471, 80
      %v503 = vsel %vm448, %v471, 80
      %v504 = vsel %vm449, %v472, 80
      %v505 = vsel %vm450, %v472, 80
      %v506 = vsel %vm451, %v472, 80
      %v507 = vsel %vm452, %v472, 80
      %v508 = vsel %vm453, %v473, 80
      %v509 = vsel %vm454, %v473, 80
      %v510 = vsel %vm455, %v473, 80
      %v511 = vsel %vm456, %v473, 80
      %v512 = vsel %vm457, %v474, 80
      %v513 = vsel %vm458, %v474, 80
      %v514 = vsel %vm459, %v474, 80
      %v515 = vsel %vm460, %v474, 80
      %v516 = vsel %vm461, %v475, 80
      %v517 = vsel %vm462, %v475, 80
      %v518 = vsel %vm463, %v475, 80
      %v519 = vsel %vm464, %v475, 80
      %vm520 = vcmp.lt.s32.totalorder %v476, %v480
      %v521 = vsel %vm520, %v476, %v480
      %vm522 = vcmp.lt.s32.totalorder %v521, %v484
      %v523 = vsel %vm522, %v521, %v484
      %vm524 = vcmp.lt.s32.totalorder %v523, %v488
      %v525 = vsel %vm524, %v523, %v488
      %vm526 = vcmp.lt.s32.totalorder %v525, %v492
      %v527 = vsel %vm526, %v525, %v492
      %vm528 = vcmp.lt.s32.totalorder %v527, %v496
      %v529 = vsel %vm528, %v527, %v496
      %vm530 = vcmp.lt.s32.totalorder %v529, %v500
      %v531 = vsel %vm530, %v529, %v500
      %vm532 = vcmp.lt.s32.totalorder %v531, %v504
      %v533 = vsel %vm532, %v531, %v504
      %vm534 = vcmp.lt.s32.totalorder %v533, %v508
      %v535 = vsel %vm534, %v533, %v508
      %vm536 = vcmp.lt.s32.totalorder %v535, %v512
      %v537 = vsel %vm536, %v535, %v512
      %v538 = vsel %vm317, %v516, 2147483647
      %vm539 = vcmp.lt.s32.totalorder %v537, %v538
      %v540 = vsel %vm539, %v537, %v538
      %v541 = vrot.slane %v540, 4
      %vm542 = vcmp.lt.s32.totalorder %v540, %v541
      %v543 = vsel %vm542, %v540, %v541
      %v544 = vrot.slane %v543, 2
      %vm545 = vcmp.lt.s32.totalorder %v543, %v544
      %v546 = vsel %vm545, %v543, %v544
      %v547 = vrot.slane %v546, 1
      %vm548 = vcmp.lt.s32.totalorder %v546, %v547
      %v549 = vsel %vm548, %v546, %v547
      %vm550 = vcmp.lt.s32.totalorder %v477, %v481
      %v551 = vsel %vm550, %v477, %v481
      %vm552 = vcmp.lt.s32.totalorder %v551, %v485
      %v553 = vsel %vm552, %v551, %v485
      %vm554 = vcmp.lt.s32.totalorder %v553, %v489
      %v555 = vsel %vm554, %v553, %v489
      %vm556 = vcmp.lt.s32.totalorder %v555, %v493
      %v557 = vsel %vm556, %v555, %v493
      %vm558 = vcmp.lt.s32.totalorder %v557, %v497
      %v559 = vsel %vm558, %v557, %v497
      %vm560 = vcmp.lt.s32.totalorder %v559, %v501
      %v561 = vsel %vm560, %v559, %v501
      %vm562 = vcmp.lt.s32.totalorder %v561, %v505
      %v563 = vsel %vm562, %v561, %v505
      %vm564 = vcmp.lt.s32.totalorder %v563, %v509
      %v565 = vsel %vm564, %v563, %v509
      %vm566 = vcmp.lt.s32.totalorder %v565, %v513
      %v567 = vsel %vm566, %v565, %v513
      %v568 = vsel %vm317, %v517, 2147483647
      %vm569 = vcmp.lt.s32.totalorder %v567, %v568
      %v570 = vsel %vm569, %v567, %v568
      %v571 = vrot.slane %v570, 4
      %vm572 = vcmp.lt.s32.totalorder %v570, %v571
      %v573 = vsel %vm572, %v570, %v571
      %v574 = vrot.slane %v573, 2
      %vm575 = vcmp.lt.s32.totalorder %v573, %v574
      %v576 = vsel %vm575, %v573, %v574
      %v577 = vrot.slane %v576, 1
      %vm578 = vcmp.lt.s32.totalorder %v576, %v577
      %v579 = vsel %vm578, %v576, %v577
      %vm580 = vcmp.lt.s32.totalorder %v478, %v482
      %v581 = vsel %vm580, %v478, %v482
      %vm582 = vcmp.lt.s32.totalorder %v581, %v486
      %v583 = vsel %vm582, %v581, %v486
      %vm584 = vcmp.lt.s32.totalorder %v583, %v490
      %v585 = vsel %vm584, %v583, %v490
      %vm586 = vcmp.lt.s32.totalorder %v585, %v494
      %v587 = vsel %vm586, %v585, %v494
      %vm588 = vcmp.lt.s32.totalorder %v587, %v498
      %v589 = vsel %vm588, %v587, %v498
      %vm590 = vcmp.lt.s32.totalorder %v589, %v502
      %v591 = vsel %vm590, %v589, %v502
      %vm592 = vcmp.lt.s32.totalorder %v591, %v506
      %v593 = vsel %vm592, %v591, %v506
      %vm594 = vcmp.lt.s32.totalorder %v593, %v510
      %v595 = vsel %vm594, %v593, %v510
      %vm596 = vcmp.lt.s32.totalorder %v595, %v514
      %v597 = vsel %vm596, %v595, %v514
      %v598 = vsel %vm317, %v518, 2147483647
      %vm599 = vcmp.lt.s32.totalorder %v597, %v598
      %v600 = vsel %vm599, %v597, %v598
      %v601 = vrot.slane %v600, 4
      %vm602 = vcmp.lt.s32.totalorder %v600, %v601
      %v603 = vsel %vm602, %v600, %v601
      %v604 = vrot.slane %v603, 2
      %vm605 = vcmp.lt.s32.totalorder %v603, %v604
      %v606 = vsel %vm605, %v603, %v604
      %v607 = vrot.slane %v606, 1
      %vm608 = vcmp.lt.s32.totalorder %v606, %v607
      %v609 = vsel %vm608, %v606, %v607
      %vm610 = vcmp.lt.s32.totalorder %v479, %v483
      %v611 = vsel %vm610, %v479, %v483
      %vm612 = vcmp.lt.s32.totalorder %v611, %v487
      %v613 = vsel %vm612, %v611, %v487
      %vm614 = vcmp.lt.s32.totalorder %v613, %v491
      %v615 = vsel %vm614, %v613, %v491
      %vm616 = vcmp.lt.s32.totalorder %v615, %v495
      %v617 = vsel %vm616, %v615, %v495
      %vm618 = vcmp.lt.s32.totalorder %v617, %v499
      %v619 = vsel %vm618, %v617, %v499
      %vm620 = vcmp.lt.s32.totalorder %v619, %v503
      %v621 = vsel %vm620, %v619, %v503
      %vm622 = vcmp.lt.s32.totalorder %v621, %v507
      %v623 = vsel %vm622, %v621, %v507
      %vm624 = vcmp.lt.s32.totalorder %v623, %v511
      %v625 = vsel %vm624, %v623, %v511
      %vm626 = vcmp.lt.s32.totalorder %v625, %v515
      %v627 = vsel %vm626, %v625, %v515
      %v628 = vsel %vm317, %v519, 2147483647
      %vm629 = vcmp.lt.s32.totalorder %v627, %v628
      %v630 = vsel %vm629, %v627, %v628
      %v631 = vrot.slane %v630, 4
      %vm632 = vcmp.lt.s32.totalorder %v630, %v631
      %v633 = vsel %vm632, %v630, %v631
      %v634 = vrot.slane %v633, 2
      %vm635 = vcmp.lt.s32.totalorder %v633, %v634
      %v636 = vsel %vm635, %v633, %v634
      %v637 = vrot.slane %v636, 1
      %vm638 = vcmp.lt.s32.totalorder %v636, %v637
      %v639 = vsel %vm638, %v636, %v637
      %v640 = vcvt.s32.f32 %v549
      %v641 = vcvt.s32.f32 %v579
      %v642 = vcvt.s32.f32 %v609
      %v643 = vcvt.s32.f32 %v639
      %v644 = vsel %vm317, %v237, %v325
      %v645 = vsel %vm317, %v238, %v342
      %v646 = vsel %vm317, %v239, %v359
      %v647 = vsel %vm317, %v240, %v376
      %vm648 = vcmask 1044480
      %v649 = vsel %vm648, %v644, %v640
      %v650 = vsel %vm648, %v645, %v641
      %v651 = vsel %vm648, %v646, %v642
      %v652 = vsel %vm648, %v647, %v643
      %653 = vst [vmem:[%s154] sm:$0x3f] %v649
      %654 = vst [vmem:[%s154 + $0x8] sm:$0x3f] %v650
      %655 = vst [vmem:[%s154 + $0x10] sm:$0x3f] %v651
      %656 = vst [vmem:[%s154 + $0x18] sm:$0x3f] %v652
      %s657 = smul.u32 4, %s17
      %p658 = scmp.lt.s32.totalorder %s16, 1
      %s659 = scalar_select %p658, %s16, 1
      %p660 = scmp.lt.s32.totalorder %s657, 3
      %s661 = scalar_select %p660, %s657, 3
      %s662 = smul.addr %s659, 4
      %s663 = sadd.s32 %s661, %s662
      %s664 = smul.addr %s663, 8
      %s665 = scalar_lea.vmem %s1, %s664
      // Predicated region
      $region25: #{tpu_custom_call.1} parent=23 // pred_check
        %p666 = pneg %p72
      $region26: #{tpu_custom_call.1} parent=23 // pred_check_branch
        %668 = sbr.rel (%p666) target = $region28
      $region27: #{tpu_custom_call.1} parent=23 // pred_region
        %s669 = smul.u32 4, %s17
      $region28: #{tpu_custom_call.1} parent=23 // pred_fallthru
        _
    $region24: #{tpu_custom_call.1} parent=5 // pred_fallthru
      _
    %p670 = scmp.le.s32.totalorder 2, %s7
    // Predicated region
    $region29: #{tpu_custom_call.1} parent=5 // pred_check
      %p671 = pneg %p670
    $region30: #{tpu_custom_call.1} parent=5 // pred_check_branch
      %673 = sbr.rel (%p671) target = $region32
    $region31: #{tpu_custom_call.1} parent=5 // pred_region
      %s674 = ssub.s32 %s7, 2
      // Predicated region
      $region33: #{tpu_custom_call.1} parent=31 // pred_check
        %p675 = pneg %p78
      $region34: #{tpu_custom_call.1} parent=31 // pred_check_branch
        %677 = sbr.rel (%p675) target = $region36
      $region35: #{tpu_custom_call.1} parent=31 // pred_region
        %s678 = smul.u32 4, %s19
        %p679 = scmp.lt.s32.totalorder %s18, 1
        %s680 = scalar_select %p679, %s18, 1
        %p681 = scmp.lt.s32.totalorder %s678, 3
        %s682 = scalar_select %p681, %s678, 3
        %s683 = smul.addr %s680, 4
        %s684 = sadd.s32 %s682, %s683
        %s685 = smul.addr %s684, 8
        %s686 = scalar_lea.vmem %s1, %s685
      $region36: #{tpu_custom_call.1} parent=31 // pred_fallthru
        _
    $region32: #{tpu_custom_call.1} parent=5 // pred_fallthru
      _
  $region6: #{tpu_custom_call.1} parent=0 // loop_footer
    %s11 = sadd.s32 1, %s7
  $region7: #{tpu_custom_call.1} parent=0 // loop_footer_branch
    %6 = sbr.rel target = $region3
  $region8: #{tpu_custom_call.1} parent=0 // loop_exit
    _

</llo_original>
